<compile_context>
chip_gen: v7x
topology: tpu7x:2x2x1
jax: 0.10.0
libtpu: 0.0.40
codegen_flags: <defaults>
</compile_context>

<pallas_src>
import math

import jax
import jax.numpy as jnp
from jax.experimental import pallas as pl
from jax.experimental.pallas import tpu as pltpu


def _make_dot_attention_kernel(inv_scale, seq_len, block_s, needs_s_mask):
    def kernel(q_ref, v_ref, o_ref, m_sc, l_sc, acc_sc):
        # q_ref: [1, H]                 (resident for the whole grid)
        # v_ref: [BLOCK_B, BLOCK_S, H]  (K and V -- read once)
        # o_ref: [BLOCK_B, H]
        j = pl.program_id(1)

        @pl.when(j == 0)
        def _init():
            m_sc[...] = jnp.full_like(m_sc, -jnp.inf)
            l_sc[...] = jnp.zeros_like(l_sc)
            acc_sc[...] = jnp.zeros_like(acc_sc)

        # Fold the 1/sqrt(S) scale into the (tiny) query once per step.
        q = q_ref[...].astype(jnp.float32) * inv_scale            # [1, H]
        v = v_ref[...].astype(jnp.float32)                        # [BB, BS, H]

        if needs_s_mask:
            # Mask sequence positions of the (padded) last S block.
            s_idx = j * block_s + jax.lax.broadcasted_iota(
                jnp.int32, (1, block_s), 1)                        # [1, BS]
            valid = s_idx < seq_len
            v = jnp.where(valid[:, :, None], v, 0.0)

        # score[b, s] = sum_h v[b, s, h] * q[h]
        # (VPU mul + lane reduce; no transpose / no MXU for a T=1 matvec)
        score = jnp.sum(v * q[None, :, :], axis=-1)                # [BB, BS]
        if needs_s_mask:
            score = jnp.where(valid, score, -jnp.inf)

        # Online-softmax update (flash-style), f32 state in scratch.
        m_prev = m_sc[...]                                         # [BB, 1]
        m_new = jnp.maximum(m_prev, jnp.max(score, axis=-1, keepdims=True))
        alpha = jnp.exp(m_prev - m_new)                            # [BB, 1]
        p = jnp.exp(score - m_new)                                 # [BB, BS]
        l_sc[...] = alpha * l_sc[...] + jnp.sum(p, axis=-1, keepdims=True)
        acc_sc[...] = alpha * acc_sc[...] + jnp.sum(p[:, :, None] * v, axis=1)
        m_sc[...] = m_new

        @pl.when(j == pl.num_programs(1) - 1)
        def _finalize():
            l = l_sc[...]
            inv_l = pl.reciprocal(l, approx=True)   # EUP slot, ~free
            inv_l = inv_l * (2.0 - l * inv_l)       # one Newton step -> ~f32 exact
            o_ref[...] = (acc_sc[...] * inv_l).astype(o_ref.dtype)

    return kernel


def _choose_blocks(b, s, h, itemsize):
    """Pick (BLOCK_B, BLOCK_S) against a soft per-buffer VMEM budget."""
    budget = 2 * 1024 * 1024                     # bytes per values block (one pipeline buffer)
    full_row = s * h * itemsize                  # one batch, whole sequence
    if full_row <= budget:
        block_s = s
        block_b = min(b, max(1, budget // full_row))
    else:
        # Long sequence: tile S (online softmax handles the reduction).
        block_b = min(b, 8)
        block_s = max(8, (budget // (block_b * h * itemsize)) // 8 * 8)
        block_s = min(block_s, s)
    # Output block's second-to-last dim is BLOCK_B: must be a multiple of 8
    # or equal to the (padded) batch dim.
    if block_b >= b:
        block_b = b
    elif block_b % 8 != 0:
        block_b = max(8, (block_b // 8) * 8)
        if block_b > b:
            block_b = b
    return block_b, block_s


def dot_attention_pallas(values, additional_param, *, block_b=None, block_s=None):
    """values: [b, S, H], additional_param: [1, H]  ->  [b, 1, H]."""
    b, s, h = values.shape
    itemsize = jnp.dtype(values.dtype).itemsize
    auto_bb, auto_bs = _choose_blocks(b, s, h, itemsize)
    if block_b is None:
        block_b = auto_bb
    if block_s is None:
        block_s = auto_bs

    # Pad the batch (with zeros) to a multiple of BLOCK_B; padded rows compute
    # a harmless uniform softmax over zeros and are sliced off afterwards.
    b_pad = int(pl.cdiv(b, block_b)) * block_b
    values_in = values
    if b_pad != b:
        values_in = jnp.pad(values, ((0, b_pad - b), (0, 0), (0, 0)))

    num_s_blocks = int(pl.cdiv(s, block_s))
    needs_s_mask = (num_s_blocks * block_s != s)
    inv_scale = 1.0 / math.sqrt(float(s))   # reference scales by sqrt(source_seq_len)

    kernel = _make_dot_attention_kernel(inv_scale, s, block_s, needs_s_mask)

    out2d = pl.pallas_call(
        kernel,
        out_shape=jax.ShapeDtypeStruct((b_pad, h), values.dtype),
        grid_spec=pltpu.PrefetchScalarGridSpec(
            num_scalar_prefetch=0,
            grid=(b_pad // block_b, num_s_blocks),
            in_specs=[
                # query: single [1, H] block, same index every step -> stays
                # resident in VMEM for the whole grid (no per-step DMA).
                pl.BlockSpec((1, h), lambda i, j: (0, 0)),
                # values: read ONCE per tile, used as both K and V.
                pl.BlockSpec((block_b, block_s, h), lambda i, j: (i, j, 0)),
            ],
            out_specs=pl.BlockSpec((block_b, h), lambda i, j: (i, 0)),
            scratch_shapes=[
                pltpu.VMEM((block_b, 1), jnp.float32),   # running max  m
                pltpu.VMEM((block_b, 1), jnp.float32),   # running sum  l
                pltpu.VMEM((block_b, h), jnp.float32),   # running out  acc
            ],
        ),
        compiler_params=pltpu.CompilerParams(
            dimension_semantics=("parallel", "arbitrary"),
            vmem_limit_bytes=32 * 1024 * 1024,
        ),
    )(additional_param, values_in)

    return out2d[:b].reshape(b, 1, h)


def attention_forward(values, additional_param, keys=None, queries=None, mask=None):
    """Mirror of Attention.forward with att_type='dot'.

    values: [b, S, H].  When keys is None (the module's default path) the
    query is `additional_param` ([1, H]) broadcast over the batch and
    keys == values.  `mask` is accepted but has no effect, exactly like the
    reference (masked_fill's result is discarded there).
    """
    del mask  # documented no-op: reference's masked_fill result is discarded
    if keys is None:
        return dot_attention_pallas(values, additional_param)
    # TODO(synk): explicit keys/queries (target_seq_len > 1) dot-attention path
    # is not ported; the module's default self-attention path is implemented.
    raise NotImplementedError("explicit keys/queries path not implemented")


def _reference_forward(values, additional_param):
    b, s, h = values.shape
    queries = jnp.broadcast_to(additional_param[None, :, :], (b, 1, h))
    score = jnp.einsum("bth,bsh->bts", queries, values) / math.sqrt(float(s))
    e = jax.nn.softmax(score, axis=-1)
    return jnp.einsum("bts,bsh->bth", e, values)


if __name__ == "__main__":
    key = jax.random.PRNGKey(0)
    k1, k2, k3 = jax.random.split(key, 3)

    # Small case consistent with the module: batch=2, seq=8, hidden=32.
    B, S, H = 2, 8, 32
    values = jax.random.normal(k1, (B, S, H), dtype=jnp.float32)
    additional_param = jax.random.normal(k2, (1, H), dtype=jnp.float32)
    mask = jnp.zeros((B, 1, S), dtype=bool)   # accepted but a no-op (like the reference)

    out = attention_forward(values, additional_param, mask=mask)
    out = jax.block_until_ready(out)
    ref = _reference_forward(values, additional_param)
    assert out.shape == (B, 1, H)
    assert jnp.allclose(out, ref, atol=1e-4, rtol=1e-4), float(
        jnp.max(jnp.abs(out - ref)))

    # Exercise the S-tiled (online-softmax, masked last block) path explicitly.
    B2, S2, H2 = 4, 20, 32
    values2 = jax.random.normal(k3, (B2, S2, H2), dtype=jnp.float32)
    out2 = dot_attention_pallas(values2, additional_param, block_s=8)
    out2 = jax.block_until_ready(out2)
    ref2 = _reference_forward(values2, additional_param)
    assert out2.shape == (B2, 1, H2)
    assert jnp.allclose(out2, ref2, atol=1e-4, rtol=1e-4), float(
        jnp.max(jnp.abs(out2 - ref2)))

    print("KERNEL_OK")
</pallas_src>

<mosaic_0001>
module attributes {stable_mosaic.version = 11 : i64} {
  func.func @kernel(%arg0: i32, %arg1: i32, %arg2: memref<1x32xf32, #tpu.memory_space<vmem>>, %arg3: memref<2x8x32xf32, #tpu.memory_space<vmem>>, %arg4: memref<2x32xf32, #tpu.memory_space<vmem>>, %arg5: memref<2x1xf32, #tpu.memory_space<vmem>>, %arg6: memref<2x1xf32, #tpu.memory_space<vmem>>, %arg7: memref<2x32xf32, #tpu.memory_space<vmem>>) attributes {dimension_semantics = [#tpu.dimension_semantics<parallel>, #tpu.dimension_semantics<arbitrary>], iteration_bounds = array<i64: 1, 1>, scalar_prefetch = 0 : i64, scratch_operands = 3 : i64, tpu.core_type = #tpu.core_type<tc>, window_params = [{pipeline_mode = #tpu.pipeline_mode<synchronous>, transform_indices = @transform_0, window_bounds = array<i64: 1, 32>}, {transform_indices = @transform_1, window_bounds = array<i64: 2, 8, 32>}, {transform_indices = @transform_2, window_bounds = array<i64: 2, 32>}]} {
    %c0_i32 = arith.constant 0 : i32
    %0 = arith.cmpi eq, %arg1, %c0_i32 : i32
    %1 = arith.extui %0 : i1 to i32
    %c0_i32_0 = arith.constant 0 : i32
    %2 = arith.cmpi ne, %1, %c0_i32_0 : i32
    scf.if %2 {
      %cst_23 = arith.constant 0xFF800000 : f32
      %39 = vector.broadcast %cst_23 : f32 to vector<2x1xf32>
      %c0_24 = arith.constant 0 : index
      %c0_25 = arith.constant 0 : index
      %40 = vector.load %arg5[%c0_24, %c0_25] : memref<2x1xf32, #tpu.memory_space<vmem>>, vector<2x1xf32>
      tpu.vector_store %arg5[%c0_24, %c0_25], %39 {strides = array<i32>} : memref<2x1xf32, #tpu.memory_space<vmem>>, vector<2x1xf32>,
      %cst_26 = arith.constant 0.000000e+00 : f32
      %41 = vector.broadcast %cst_26 : f32 to vector<2x1xf32>
      %c0_27 = arith.constant 0 : index
      %c0_28 = arith.constant 0 : index
      %42 = vector.load %arg6[%c0_27, %c0_28] : memref<2x1xf32, #tpu.memory_space<vmem>>, vector<2x1xf32>
      tpu.vector_store %arg6[%c0_27, %c0_28], %41 {strides = array<i32>} : memref<2x1xf32, #tpu.memory_space<vmem>>, vector<2x1xf32>,
      %cst_29 = arith.constant 0.000000e+00 : f32
      %43 = vector.broadcast %cst_29 : f32 to vector<2x32xf32>
      %c0_30 = arith.constant 0 : index
      %c0_31 = arith.constant 0 : index
      %44 = vector.load %arg7[%c0_30, %c0_31] : memref<2x32xf32, #tpu.memory_space<vmem>>, vector<2x32xf32>
      tpu.vector_store %arg7[%c0_30, %c0_31], %43 {strides = array<i32>} : memref<2x32xf32, #tpu.memory_space<vmem>>, vector<2x32xf32>,
    } else {
    }
    %c0 = arith.constant 0 : index
    %c0_1 = arith.constant 0 : index
    %3 = vector.load %arg2[%c0, %c0_1] : memref<1x32xf32, #tpu.memory_space<vmem>>, vector<1x32xf32>
    %cst = arith.constant 0.353553385 : f32
    %4 = vector.broadcast %cst : f32 to vector<1x32xf32>
    %5 = arith.mulf %3, %4 : vector<1x32xf32>
    %c0_2 = arith.constant 0 : index
    %c0_3 = arith.constant 0 : index
    %c0_4 = arith.constant 0 : index
    %6 = vector.load %arg3[%c0_2, %c0_3, %c0_4] : memref<2x8x32xf32, #tpu.memory_space<vmem>>, vector<2x8x32xf32>
    %7 = vector.shape_cast %5 : vector<1x32xf32> to vector<1x1x32xf32>
    %8 = vector.broadcast %7 : vector<1x1x32xf32> to vector<2x8x32xf32>
    %9 = arith.mulf %6, %8 : vector<2x8x32xf32>
    %cst_5 = arith.constant dense<0.000000e+00> : vector<2x8xf32>
    %10 = vector.multi_reduction <add>, %9, %cst_5 [2] : vector<2x8x32xf32> to vector<2x8xf32>
    %c0_6 = arith.constant 0 : index
    %c0_7 = arith.constant 0 : index
    %11 = vector.load %arg5[%c0_6, %c0_7] : memref<2x1xf32, #tpu.memory_space<vmem>>, vector<2x1xf32>
    %cst_8 = arith.constant dense<0xFF800000> : vector<2xf32>
    %12 = vector.multi_reduction <maximumf>, %10, %cst_8 [1] : vector<2x8xf32> to vector<2xf32>
    %13 = vector.shape_cast %12 : vector<2xf32> to vector<2x1xf32>
    %14 = arith.maximumf %11, %13 : vector<2x1xf32>
    %15 = arith.subf %11, %14 : vector<2x1xf32>
    %16 = math.exp %15 : vector<2x1xf32>
    %17 = vector.broadcast %14 : vector<2x1xf32> to vector<2x8xf32>
    %18 = arith.subf %10, %17 : vector<2x8xf32>
    %19 = math.exp %18 : vector<2x8xf32>
    %c0_9 = arith.constant 0 : index
    %c0_10 = arith.constant 0 : index
    %20 = vector.load %arg6[%c0_9, %c0_10] : memref<2x1xf32, #tpu.memory_space<vmem>>, vector<2x1xf32>
    %21 = arith.mulf %16, %20 : vector<2x1xf32>
    %cst_11 = arith.constant dense<0.000000e+00> : vector<2xf32>
    %22 = vector.multi_reduction <add>, %19, %cst_11 [1] : vector<2x8xf32> to vector<2xf32>
    %23 = vector.shape_cast %22 : vector<2xf32> to vector<2x1xf32>
    %24 = arith.addf %21, %23 : vector<2x1xf32>
    %c0_12 = arith.constant 0 : index
    %c0_13 = arith.constant 0 : index
    %25 = vector.load %arg6[%c0_12, %c0_13] : memref<2x1xf32, #tpu.memory_space<vmem>>, vector<2x1xf32>
    tpu.vector_store %arg6[%c0_12, %c0_13], %24 {strides = array<i32>} : memref<2x1xf32, #tpu.memory_space<vmem>>, vector<2x1xf32>,
    %c0_14 = arith.constant 0 : index
    %c0_15 = arith.constant 0 : index
    %26 = vector.load %arg7[%c0_14, %c0_15] : memref<2x32xf32, #tpu.memory_space<vmem>>, vector<2x32xf32>
    %27 = vector.broadcast %16 : vector<2x1xf32> to vector<2x32xf32>
    %28 = arith.mulf %27, %26 : vector<2x32xf32>
    %29 = vector.shape_cast %19 : vector<2x8xf32> to vector<2x8x1xf32>
    %30 = vector.broadcast %29 : vector<2x8x1xf32> to vector<2x8x32xf32>
    %31 = arith.mulf %30, %6 : vector<2x8x32xf32>
    %cst_16 = arith.constant dense<0.000000e+00> : vector<2x32xf32>
    %32 = vector.multi_reduction <add>, %31, %cst_16 [1] : vector<2x8x32xf32> to vector<2x32xf32>
    %33 = arith.addf %28, %32 : vector<2x32xf32>
    %c0_17 = arith.constant 0 : index
    %c0_18 = arith.constant 0 : index
    %34 = vector.load %arg7[%c0_17, %c0_18] : memref<2x32xf32, #tpu.memory_space<vmem>>, vector<2x32xf32>
    tpu.vector_store %arg7[%c0_17, %c0_18], %33 {strides = array<i32>} : memref<2x32xf32, #tpu.memory_space<vmem>>, vector<2x32xf32>,
    %c0_19 = arith.constant 0 : index
    %c0_20 = arith.constant 0 : index
    %35 = vector.load %arg5[%c0_19, %c0_20] : memref<2x1xf32, #tpu.memory_space<vmem>>, vector<2x1xf32>
    tpu.vector_store %arg5[%c0_19, %c0_20], %14 {strides = array<i32>} : memref<2x1xf32, #tpu.memory_space<vmem>>, vector<2x1xf32>,
    %c0_i32_21 = arith.constant 0 : i32
    %36 = arith.cmpi eq, %arg1, %c0_i32_21 : i32
    %37 = arith.extui %36 : i1 to i32
    %c0_i32_22 = arith.constant 0 : i32
    %38 = arith.cmpi ne, %37, %c0_i32_22 : i32
    scf.if %38 {
      %c0_23 = arith.constant 0 : index
      %c0_24 = arith.constant 0 : index
      %39 = vector.load %arg6[%c0_23, %c0_24] : memref<2x1xf32, #tpu.memory_space<vmem>>, vector<2x1xf32>
      %40 = tpu.reciprocal %39 {approx = true} : vector<2x1xf32> -> vector<2x1xf32>
      %41 = arith.mulf %39, %40 : vector<2x1xf32>
      %cst_25 = arith.constant 2.000000e+00 : f32
      %42 = vector.broadcast %cst_25 : f32 to vector<2x1xf32>
      %43 = arith.subf %42, %41 : vector<2x1xf32>
      %44 = arith.mulf %40, %43 : vector<2x1xf32>
      %c0_26 = arith.constant 0 : index
      %c0_27 = arith.constant 0 : index
      %45 = vector.load %arg7[%c0_26, %c0_27] : memref<2x32xf32, #tpu.memory_space<vmem>>, vector<2x32xf32>
      %46 = vector.broadcast %44 : vector<2x1xf32> to vector<2x32xf32>
      %47 = arith.mulf %45, %46 : vector<2x32xf32>
      %c0_28 = arith.constant 0 : index
      %c0_29 = arith.constant 0 : index
      %48 = vector.load %arg4[%c0_28, %c0_29] : memref<2x32xf32, #tpu.memory_space<vmem>>, vector<2x32xf32>
      tpu.vector_store %arg4[%c0_28, %c0_29], %47 {strides = array<i32>} : memref<2x32xf32, #tpu.memory_space<vmem>>, vector<2x32xf32>,
    } else {
    }
    return
  }
  func.func @transform_0(%arg0: i32, %arg1: i32) -> (i32, i32) {
    %c0_i32 = arith.constant 0 : i32
    %c0_i32_0 = arith.constant 0 : i32
    %c0_i32_1 = arith.constant 0 : i32
    return %c0_i32, %c0_i32_0 : i32, i32
  }
  func.func @transform_1(%arg0: i32, %arg1: i32) -> (i32, i32, i32) {
    %c0_i32 = arith.constant 0 : i32
    %c0_i32_0 = arith.constant 0 : i32
    return %arg0, %arg1, %c0_i32 : i32, i32, i32
  }
  func.func @transform_2(%arg0: i32, %arg1: i32) -> (i32, i32) {
    %c0_i32 = arith.constant 0 : i32
    %c0_i32_0 = arith.constant 0 : i32
    return %arg0, %c0_i32 : i32, i32
  }
}

</mosaic_0001>

<llo_original>
// kernel: tpu_custom_call.1
$region0: #{tpu_custom_call.1}
  #allocation0 [shape = 'u32[]', space=smem, size = 0x4, offset = 0x4, fixed_abs, tag = 'smem constant byte address 0x4 - core index']
  #allocation1 [shape = 'u32[144,128]{1,0:T(1,128)}', space=vmem, size = 0x12000, scoped, tag = 'internal scratch']
  #allocation2 [shape = 'f32[2,1]{1,0:T(2,128)}', space=vmem, size = 0x400, scoped, tag = 'scratch operand']
  #allocation3 [shape = 'f32[2,1]{1,0:T(2,128)}', space=vmem, size = 0x400, scoped, tag = 'scratch operand']
  #allocation4 [shape = 'f32[2,32]{1,0:T(2,128)}', space=vmem, size = 0x400, scoped, tag = 'scratch operand']
  %s0 = inlined_call_operand.hbm [shape: f32[1,32], index: 0, kind: input, shape index: {}]
  %s1 = inlined_call_operand.hbm [shape: f32[2,8,32], index: 1, kind: input, shape index: {}]
  %s2 = inlined_call_operand.hbm [shape: f32[2,32], index: 2, kind: output, shape index: {}]
  %s3 = sld [smem:[#allocation0]]
  $region34: #{tpu_custom_call.1} parent=0
    _
  %s5 = ssub.s32 1, %s3
  %s6 = scalar_select 0, %s5, %s3
  $region1: #{tpu_custom_call.1} parent=0
    #allocation5 [shape = 'u8[512]{0}', space=vmem, size = 0x400, scoped, tag = 'input window, operand 0, single buffered']
    #allocation6 [shape = 's32[1]{0}', space=sflag, size = 0x4, scoped, tag = 'scoped memory for tpu_custom_call.1']
    #allocation7 [shape = 's32[1]{0}', space=sflag, size = 0x4, scoped, tag = 'scoped memory for tpu_custom_call.1']
    #allocation8 [shape = 'u8[8192]{0}', space=vmem, size = 0x2000, scoped, tag = 'input window, operand 1, single buffered']
    #allocation9 [shape = 's32[1]{0}', space=sflag, size = 0x4, scoped, tag = 'scoped memory for tpu_custom_call.1']
    #allocation10 [shape = 'u8[1024]{0}', space=vmem, size = 0x400, scoped, tag = 'output window, operand 0, single buffered']
    %7 = vsyncpa [#allocation6], 0
    %8 = vsyncpa [#allocation9], 0
    %9 = vsyncpa [#allocation7], 0
    // Predicated region
    $region2: #{tpu_custom_call.1} parent=1 // pred_check
      _
    $region3: #{tpu_custom_call.1} parent=1 // pred_check_branch
      %11 = sbr.rel (0) target = $region5
    $region4: #{tpu_custom_call.1} parent=1 // pred_region
      %s13 = ssub.s32 16, 16
      %14 = vsyncadd [#allocation6], %s13
      %s16 = sshll.u32 [#allocation5], 4
      %s17 = int_to_ptr.vmem [resolvable:$true] %s16
      %19 = dma.hbm_to_vmem [thread:$0]  %s0, 16, %s17, [#allocation6]
    $region5: #{tpu_custom_call.1} parent=1 // pred_fallthru
      _
    // Predicated region
    $region6: #{tpu_custom_call.1} parent=1 // pred_check
      _
    $region7: #{tpu_custom_call.1} parent=1 // pred_check_branch
      %21 = sbr.rel (0) target = $region9
    $region8: #{tpu_custom_call.1} parent=1 // pred_region
      %s23 = ssub.s32 256, 256
      %24 = vsyncadd [#allocation9], %s23
      %s25 = sshll.u32 [#allocation8], 4
      %s26 = int_to_ptr.vmem [resolvable:$true] %s25
      %31 = dma.hbm_to_vmem [thread:$0]  %s1, 256, %s26, [#allocation9], 128, 128, 8
    $region9: #{tpu_custom_call.1} parent=1 // pred_fallthru
      _
    // Predicated region
    $region10: #{tpu_custom_call.1} parent=1 // pred_check
      _
    $region11: #{tpu_custom_call.1} parent=1 // pred_check_branch
      %33 = sbr.rel (0) target = $region13
    $region12: #{tpu_custom_call.1} parent=1 // pred_region
      %34 = dma.done [#allocation6], 16
    $region13: #{tpu_custom_call.1} parent=1 // pred_fallthru
      _
    // Predicated region
    $region14: #{tpu_custom_call.1} parent=1 // pred_check
      _
    $region15: #{tpu_custom_call.1} parent=1 // pred_check_branch
      %36 = sbr.rel (0) target = $region17
    $region16: #{tpu_custom_call.1} parent=1 // pred_region
      %37 = dma.done [#allocation9], 256
    $region17: #{tpu_custom_call.1} parent=1 // pred_fallthru
      _
    %p38 = scmp.eq.s32.totalorder 0, 0
    // Predicated region
    $region18: #{tpu_custom_call.1} parent=1 // pred_check
      %p39 = pneg %p38
    $region19: #{tpu_custom_call.1} parent=1 // pred_check_branch
      %41 = sbr.rel (%p39) target = $region21
    $region20: #{tpu_custom_call.1} parent=1 // pred_region
      %vm42 = vcmask 1024
      %43 = vst.msk [vmem:[#allocation2] sm:$0x3] %vm42, -inf
      %44 = vst.msk [vmem:[#allocation3] sm:$0x3] %vm42, 0.0
      %vm45 = vcmask 254976
      %46 = vst.msk [vmem:[#allocation4] sm:$0x3] %vm45, 0.0
    $region21: #{tpu_custom_call.1} parent=1 // pred_fallthru
      _
    %v47 = vld [vmem:[#allocation5] sm:$0x1]
    %v48 = vmul.f32 %v47, 0.35355338
    %v49 = vld [vmem:[#allocation8] sm:$0xff]
    %v50 = vld [vmem:[#allocation8 + $0x8] sm:$0xff]
    %v52 = vlaneseq
    %v53 = vshrl.u32 %v52, 7
    %v54 = vsub.s32 0, %v53
    %v55 = vrot.slane %v48, %v54
    %v57 = vmul.f32 %v49, %v55
    %v58 = vmul.f32 %v50, %v55
    %vm59 = vcmask 261120
    %v60 = vsel %vm59, %v57, 0.0
    %61 = vadd.xlane.f32.xlu0 %v60
    %v62 = vpop.xlane.xlu0 %61
    %v63 = vsel %vm59, %v58, 0.0
    %64 = vadd.xlane.f32.xlu0 %v63
    %v65 = vpop.xlane.xlu0 %64
    %v66 = vld [vmem:[#allocation2] sm:$0x3]
    %v69 = vlaneseq
    %v70 = vand.u32 %v69, 127
    %v71 = vlaneseq
    %v72 = vshrl.u32 %v71, 7
    %v73 = vsub.s32 %v70, %v72
    %v74 = vrot.slane %v62, %v73
    %v75 = vlaneseq
    %v76 = vshrl.u32 %v75, 7
    %v77 = vsub.s32 %v70, %v76
    %v78 = vrot.slane %v65, %v77
    %vm79 = vcmask 1041409
    %v80 = vsel %vm79, %v78, %v74
    %vm82 = vcmask 58368
    %v83 = vsel %vm82, %v80, -inf
    %84 = vmax.xlane.f32.xlu0 %v83
    %v85 = vpop.xlane.xlu0 %84
    %v86 = vmax.f32 %v66, %v85
    %v87 = vsub.f32 %v66, %v86
    %v88 = vmul.f32 %v87, 1.442695
    %v89 = vpow.pop %v88
    %91 = vset.pattern.permute.xlu0 0
    %92 = vperm.xlu0 %91, %v86
    %v93 = vpop.permute.xlu0 %92
    %v94 = vlaneseq
    %v95 = vshrl.u32 %v94, 7
    %v96 = vsub.s32 0, %v95
    %v97 = vrot.slane %v93, %v96
    %v98 = vlaneseq
    %v99 = vshrl.u32 %v98, 7
    %v100 = vsub.s32 1, %v99
    %v101 = vrot.slane %v93, %v100
    %v104 = vsub.f32 %v62, %v97
    %v105 = vsub.f32 %v65, %v101
    %v106 = vmul.f32 %v104, 1.442695
    %v107 = vpow.pop %v106
    %v108 = vmul.f32 %v105, 1.442695
    %v109 = vpow.pop %v108
    %v110 = vld [vmem:[#allocation3] sm:$0x3]
    %v111 = vmul.f32 %v89, %v110
    %114 = vset.pattern.permute.xlu0 0
    %115 = vperm.xlu0 %114, %v107
    %v116 = vpop.permute.xlu0 %115
    %117 = vset.pattern.permute.xlu0 0
    %118 = vperm.xlu0 %117, %v109
    %v119 = vpop.permute.xlu0 %118
    %v120 = vlaneseq
    %v121 = vshrl.u32 %v120, 7
    %v122 = vsub.s32 %v70, %v121
    %v123 = vrot.slane %v116, %v122
    %v124 = vlaneseq
    %v125 = vshrl.u32 %v124, 7
    %v126 = vsub.s32 %v70, %v125
    %v127 = vrot.slane %v119, %v126
    %v128 = vsel %vm79, %v127, %v123
    %v130 = vsel %vm82, %v128, 0.0
    %131 = vadd.xlane.f32.xlu0 %v130
    %v132 = vpop.xlane.xlu0 %131
    %v133 = vadd.f32 %v111, %v132
    %vm134 = vcmask 1024
    %135 = vst.msk [vmem:[#allocation3] sm:$0x3] %vm134, %v133
    %v136 = vld [vmem:[#allocation4] sm:$0x3]
    %138 = vset.pattern.permute.xlu0 0
    %139 = vperm.xlu0 %138, %v89
    %v140 = vpop.permute.xlu0 %139
    %v142 = vmul.f32 %v140, %v136
    %v145 = vmul.f32 %v116, %v49
    %v146 = vmul.f32 %v119, %v50
    %v147 = vsel %vm59, %v145, 0.0
    %v148 = vrot.slane %v147, 4
    %v149 = vadd.f32 %v147, %v148
    %v150 = vrot.slane %v149, 2
    %v151 = vadd.f32 %v149, %v150
    %v152 = vrot.slane %v151, 1
    %v153 = vadd.f32 %v151, %v152
    %v154 = vsel %vm59, %v146, 0.0
    %v155 = vrot.slane %v154, 4
    %v156 = vadd.f32 %v154, %v155
    %v157 = vrot.slane %v156, 2
    %v158 = vadd.f32 %v156, %v157
    %v159 = vrot.slane %v158, 1
    %v160 = vadd.f32 %v158, %v159
    %v163 = vsel %vm79, %v160, %v153
    %v165 = vadd.f32 %v142, %v163
    %vm166 = vcmask 254976
    %167 = vst.msk [vmem:[#allocation4] sm:$0x3] %vm166, %v165
    %168 = vst.msk [vmem:[#allocation2] sm:$0x3] %vm134, %v86
    // Predicated region
    $region22: #{tpu_custom_call.1} parent=1 // pred_check
      %p169 = pneg %p38
    $region23: #{tpu_custom_call.1} parent=1 // pred_check_branch
      %171 = sbr.rel (%p169) target = $region25
    $region24: #{tpu_custom_call.1} parent=1 // pred_region
      %v172 = vld [vmem:[#allocation3] sm:$0x3]
      %v173 = vrcp.pop %v172
      %v174 = vmul.f32 %v172, %v173
      %v175 = vsub.f32 2.0, %v174
      %v176 = vmul.f32 %v173, %v175
      %v177 = vld [vmem:[#allocation4] sm:$0x3]
      %179 = vset.pattern.permute.xlu0 0
      %180 = vperm.xlu0 %179, %v176
      %v181 = vpop.permute.xlu0 %180
      %v183 = vmul.f32 %v177, %v181
      %184 = vst.msk [vmem:[#allocation10] sm:$0x3] %vm166, %v183
    $region25: #{tpu_custom_call.1} parent=1 // pred_fallthru
      _
    // Predicated region
    $region26: #{tpu_custom_call.1} parent=1 // pred_check
      _
    $region27: #{tpu_custom_call.1} parent=1 // pred_check_branch
      %186 = sbr.rel (0) target = $region29
    $region28: #{tpu_custom_call.1} parent=1 // pred_region
      %s188 = ssub.s32 32, 32
      %189 = vsyncadd [#allocation7], %s188
      %s191 = sshll.u32 [#allocation10], 4
      %s192 = int_to_ptr.vmem [resolvable:$true] %s191
      %194 = dma.vmem_to_hbm [thread:$0]  %s192, 32, %s2, [#allocation7]
    $region29: #{tpu_custom_call.1} parent=1 // pred_fallthru
      _
    // Predicated region
    $region30: #{tpu_custom_call.1} parent=1 // pred_check
      _
    $region31: #{tpu_custom_call.1} parent=1 // pred_check_branch
      %196 = sbr.rel (0) target = $region33
    $region32: #{tpu_custom_call.1} parent=1 // pred_region
      %197 = dma.done [#allocation7], 32
    $region33: #{tpu_custom_call.1} parent=1 // pred_fallthru
      _
    %198 = vsyncpa [#allocation6], 1
    %199 = vsyncpa [#allocation9], 1
    %200 = vsyncpa [#allocation7], 1

</llo_original>
